<compile_context>
chip_gen: v6e
topology: v6e:2x2x1
jax: 0.10.0
libtpu: 0.0.40
codegen_flags: <defaults>
</compile_context>

<pallas_src>
from functools import partial

import jax
import jax.numpy as jnp
from jax.experimental import pallas as pl
from jax.experimental.pallas import tpu as pltpu

DELTA = 1.0

# Deterministic module "parameters" (nn.Parameter(torch.tensor(1.0)) x3). They only feed
# the log(alpha+1) regularization, which is dead code in the PyTorch return expression.
ALPHA1 = jnp.float32(1.0)
ALPHA2 = jnp.float32(1.0)
ALPHA3 = jnp.float32(1.0)


def _total_loss_kernel(hub_scale, pen_scale, kl_scale,
                       pred_ref, truth_ref, mask_ref, acc_ref):
    """One (B, C, TILE_N) tile: accumulate the pre-scaled sum of all three loss terms."""
    k = pl.program_id(1)

    @pl.when(k == 0)
    def _init():
        acc_ref[...] = jnp.zeros_like(acc_ref)

    # Stream native dtype (e.g. bf16) through the BlockSpec; compute in f32.
    pred = pred_ref[...].astype(jnp.float32)     # (B, C, T)
    truth = truth_ref[...].astype(jnp.float32)   # (B, C, T)
    mask = mask_ref[...]                         # (B, T) f32 == drivable_mask[b, n mod 2]

    diff = pred - truth

    # --- Huber (sum over C; pre-scaled by 1/(B*C*N)) ------------------------------------
    abs_diff = jnp.abs(diff)
    quad = jnp.where(abs_diff <= DELTA,
                     0.5 * abs_diff * abs_diff,
                     DELTA * (abs_diff - 0.5 * DELTA))
    partial_bn = jnp.sum(quad, axis=1) * hub_scale                    # (B, T)

    # --- Drivable-area penalty: log(1 + ||pred - truth||_C) * mask, scaled by 1/(B*N) ---
    de = jnp.sqrt(jnp.sum(diff * diff, axis=1))                       # (B, T)
    partial_bn = partial_bn + jnp.log1p(de) * mask * pen_scale

    # --- KL(softmax(truth) || softmax(pred)) per (b, n), scaled by 1/B (batchmean) ------
    # Shared shift s => t_shift - p_shift == -diff (reuse `diff`); one XLU max-reduce.
    #   kl_bn = sum_c t_sm*(-diff) + log(p_sum) - log(t_sum)
    #         = num * (1/t_sum) + log(p_sum * (1/t_sum))      (exact divide, folded logs)
    s = jnp.max(jnp.maximum(pred, truth), axis=1, keepdims=True)      # (B, 1, T)
    p_sum = jnp.sum(jnp.exp(pred - s), axis=1)                        # (B, T)
    t_exp = jnp.exp(truth - s)
    t_sum = jnp.sum(t_exp, axis=1)                                    # (B, T)
    num = jnp.sum(t_exp * (-diff), axis=1)                            # (B, T)
    inv_t = 1.0 / t_sum                                               # exact (tolerance!)
    kl_bn = num * inv_t + jnp.log(p_sum * inv_t)
    partial_bn = partial_bn + kl_bn * kl_scale

    # Single vreg-shaped partial-sum accumulation (one RMW per step).
    acc_ref[0] += partial_bn


def _round_up(x, m):
    return ((x + m - 1) // m) * m


def _gen_params():
    """(per-input-tile byte target, vmem_limit cap) tuned per TPU generation."""
    try:
        kind = jax.devices()[0].device_kind.lower()
    except Exception:
        kind = ""
    big_vmem = ("v5" in kind) or ("v6" in kind)        # 128 MiB VMEM generations
    if big_vmem:
        return 4 << 20, 96 << 20
    return 2 << 20, 48 << 20                           # v7x-safe (64 MiB per TC) default


def _plan_tiles(B, C, N, itemsize, target_bytes):
    """Pick (tile_n, num_tiles): 128-lane-aligned tiles near target_bytes, even tile count
    when tiled so the outer grid axis can split in two; padding waste <= ~1 tile."""
    n128 = _round_up(N, 128)
    lanes_cap = max(128, (target_bytes // max(1, B * C * itemsize)) // 128 * 128)
    if n128 <= lanes_cap:
        return n128, 1
    num_tiles = pl.cdiv(n128, lanes_cap)
    if num_tiles % 2:
        num_tiles += 1
    tile_n = _round_up(pl.cdiv(n128, num_tiles), 128)
    return tile_n, num_tiles


def custom_loss_forward(pred, truth, drivable_mask, labels=None, *, tile_n=None):
    """Mirrors CustomLossModule.forward(pred, truth, drivable_mask, labels).

    `labels` (classification loss) and the log(alpha+1) regularization do not contribute
    to the value returned by the PyTorch forward, so they are not computed here.
    """
    # TODO(synk): classification_loss / log(alpha+1) regularization are dead code in the
    # PyTorch forward's return expression, so they are intentionally not in the kernel.
    pred = jnp.asarray(pred)
    truth = jnp.asarray(truth)
    drivable_mask = jnp.asarray(drivable_mask, jnp.float32)

    B, C, N = pred.shape
    if truth.shape != (B, C, N):
        raise ValueError(f"truth shape {truth.shape} != pred shape {(B, C, N)}")
    if drivable_mask.shape != (B, 2):
        # Only the 2-D drivable_mask case of the PyTorch module is supported.
        raise ValueError(f"drivable_mask must be (B, 2); got {drivable_mask.shape}")
    if N % 2 != 0:
        raise ValueError("N must be even (PyTorch reshapes DE to (B, -1, 2))")
    if truth.dtype != pred.dtype:
        truth = truth.astype(pred.dtype)

    itemsize = jnp.dtype(pred.dtype).itemsize
    target_bytes, vmem_cap = _gen_params()

    if tile_n is None:
        tile_n, num_tiles = _plan_tiles(B, C, N, itemsize, target_bytes)
    else:
        assert tile_n % 2 == 0, tile_n
        num_tiles = pl.cdiv(_round_up(N, 128), tile_n)
        assert tile_n % 128 == 0 or num_tiles == 1, (tile_n, num_tiles)

    n_final = tile_n * num_tiles
    if n_final != N:
        # Zero-pad BOTH tensors: pred == truth on padded lanes, so Huber, penalty and KL
        # contributions there are exactly 0 (no in-kernel lane mask needed).
        pad = ((0, 0), (0, 0), (0, n_final - N))
        pred = jnp.pad(pred, pad)
        truth = jnp.pad(truth, pad)

    num_splits = 2 if (num_tiles >= 2 and num_tiles % 2 == 0) else 1
    tiles_per_split = num_tiles // num_splits
    grid = (num_splits, tiles_per_split)

    # drivable_mask[b, n mod 2] expanded for one lane tile; identical for every tile
    # (tile_n is even, tiles start on even n), resident in VMEM via constant index_map.
    mask_tile = jnp.tile(drivable_mask, (1, tile_n // 2))             # (B, tile_n) f32

    def data_map(c, k):
        return (0, 0, c * tiles_per_split + k)

    # Pre-scale each term by its mean denominator (ORIGINAL sizes, not padded).
    hub_scale = 1.0 / float(B * C * N)
    pen_scale = 1.0 / float(B * N)
    kl_scale = 1.0 / float(B)

    tile_bytes = B * C * tile_n * itemsize
    # Budget: 2 inputs x double-buffer + ~4-6 live (B,C,T) f32 temporaries + headroom,
    # clamped below the v7x per-TC VMEM capacity.
    vmem_limit = int(min(vmem_cap, max(32 << 20, 12 * tile_bytes + (4 << 20))))

    cost = pl.CostEstimate(
        flops=int(30 * B * C * n_final + 12 * B * n_final),
        transcendentals=int(2 * B * C * n_final + 3 * B * n_final),
        bytes_accessed=int(2 * B * C * n_final * itemsize + B * tile_n * 4
                           + num_splits * B * tile_n * 4),
    )

    partials = pl.pallas_call(
        partial(_total_loss_kernel, hub_scale, pen_scale, kl_scale),
        out_shape=jax.ShapeDtypeStruct((num_splits, B, tile_n), jnp.float32),
        grid=grid,
        in_specs=[
            pl.BlockSpec((B, C, tile_n), data_map),                   # pred (native dtype)
            pl.BlockSpec((B, C, tile_n), data_map),                   # truth (native dtype)
            pl.BlockSpec((B, tile_n), lambda c, k: (0, 0)),           # parity mask (resident)
        ],
        out_specs=pl.BlockSpec((1, B, tile_n), lambda c, k: (c, 0, 0)),
        compiler_params=pltpu.CompilerParams(
            dimension_semantics=("parallel", "arbitrary"),
            vmem_limit_bytes=vmem_limit,
        ),
        cost_estimate=cost,
    )(pred, truth, mask_tile)

    # Tiny final combine: everything is already pre-scaled, just sum the slab(s).
    return jnp.sum(partials)


def _reference_forward(pred, truth, drivable_mask):
    """Pure-JAX reference mirroring the PyTorch math (for validation)."""
    pred = pred.astype(jnp.float32)
    truth = truth.astype(jnp.float32)
    diff = pred - truth
    ad = jnp.abs(diff)
    quad = jnp.where(ad <= DELTA, 0.5 * ad ** 2, DELTA * (ad - 0.5 * DELTA))
    base = quad.mean()
    de = jnp.sqrt(jnp.sum(diff ** 2, axis=1)).reshape(pred.shape[0], -1, 2)
    pen = jnp.log1p(de) * drivable_mask[:, None, :]                   # (B, N//2, 2)
    l_daa = base + pen.mean()
    p_lsm = jax.nn.log_softmax(pred, axis=1)
    t_sm = jax.nn.softmax(truth, axis=1)
    kl = jnp.sum(t_sm * (jnp.log(t_sm) - p_lsm)) / pred.shape[0]
    return l_daa + kl


if __name__ == "__main__":
    key = jax.random.PRNGKey(0)
    k1, k2, k3, k4 = jax.random.split(key, 4)

    # --- primary small-shape check (B, C, N) = (2, 4, 16); pad-to-128 single-tile path --
    B, C, N = 2, 4, 16
    pred = jax.random.normal(k1, (B, C, N), dtype=jnp.float32)
    truth = jax.random.normal(k2, (B, C, N), dtype=jnp.float32)
    drivable_mask = (jax.random.uniform(k3, (B, 2)) > 0.5).astype(jnp.float32)
    labels = jax.random.normal(k4, (B, C, N), dtype=jnp.float32)      # unused in the output

    out = custom_loss_forward(pred, truth, drivable_mask, labels)
    jax.block_until_ready(out)
    ref = _reference_forward(pred, truth, drivable_mask)
    assert jnp.allclose(out, ref, atol=1e-5, rtol=1e-5), (float(out), float(ref))

    # --- second check: tiled / split-core accumulation path (grid (2, 2)) ----------------
    B2, C2, N2 = 2, 4, 512
    pred2 = jax.random.normal(k1, (B2, C2, N2), dtype=jnp.float32)
    truth2 = jax.random.normal(k2, (B2, C2, N2), dtype=jnp.float32)
    mask2 = (jax.random.uniform(k3, (B2, 2)) > 0.5).astype(jnp.float32)

    out2 = custom_loss_forward(pred2, truth2, mask2, None, tile_n=128)
    jax.block_until_ready(out2)
    ref2 = _reference_forward(pred2, truth2, mask2)
    assert jnp.allclose(out2, ref2, atol=1e-5, rtol=1e-5), (float(out2), float(ref2))

    # --- third check: bf16 streamed natively through the BlockSpecs, cast in-kernel -----
    pred3 = pred2.astype(jnp.bfloat16)
    truth3 = truth2.astype(jnp.bfloat16)
    out3 = custom_loss_forward(pred3, truth3, mask2, None, tile_n=128)
    jax.block_until_ready(out3)
    ref3 = _reference_forward(pred3.astype(jnp.float32), truth3.astype(jnp.float32), mask2)
    assert jnp.allclose(out3, ref3, atol=1e-4, rtol=1e-4), (float(out3), float(ref3))

    print("KERNEL_OK")
</pallas_src>

<mosaic_0001>
module attributes {stable_mosaic.version = 11 : i64} {
  func.func @_total_loss_kernel(%arg0: i32, %arg1: i32, %arg2: memref<2x4x128xf32, #tpu.memory_space<vmem>>, %arg3: memref<2x4x128xf32, #tpu.memory_space<vmem>>, %arg4: memref<2x128xf32, #tpu.memory_space<vmem>>, %arg5: memref<1x2x128xf32, #tpu.memory_space<vmem>>) attributes {dimension_semantics = [#tpu.dimension_semantics<parallel>, #tpu.dimension_semantics<arbitrary>], iteration_bounds = array<i64: 1, 1>, scalar_prefetch = 0 : i64, scratch_operands = 0 : i64, tpu.core_type = #tpu.core_type<tc>, window_params = [{transform_indices = @transform_0, window_bounds = array<i64: 2, 4, 128>}, {transform_indices = @transform_1, window_bounds = array<i64: 2, 4, 128>}, {pipeline_mode = #tpu.pipeline_mode<synchronous>, transform_indices = @transform_2, window_bounds = array<i64: 2, 128>}, {transform_indices = @transform_3, window_bounds = array<i64: 1, 2, 128>}]} {
    %c0_i32 = arith.constant 0 : i32
    %0 = arith.cmpi eq, %arg1, %c0_i32 : i32
    %1 = arith.extui %0 : i1 to i32
    %c0_i32_0 = arith.constant 0 : i32
    %2 = arith.cmpi ne, %1, %c0_i32_0 : i32
    scf.if %2 {
      %cst_28 = arith.constant 0.000000e+00 : f32
      %59 = vector.broadcast %cst_28 : f32 to vector<1x2x128xf32>
      %c0_29 = arith.constant 0 : index
      %c0_30 = arith.constant 0 : index
      %c0_31 = arith.constant 0 : index
      %60 = vector.load %arg5[%c0_29, %c0_30, %c0_31] : memref<1x2x128xf32, #tpu.memory_space<vmem>>, vector<1x2x128xf32>
      tpu.vector_store %arg5[%c0_29, %c0_30, %c0_31], %59 {strides = array<i32>} : memref<1x2x128xf32, #tpu.memory_space<vmem>>, vector<1x2x128xf32>,
    } else {
    }
    %c0 = arith.constant 0 : index
    %c0_1 = arith.constant 0 : index
    %c0_2 = arith.constant 0 : index
    %3 = vector.load %arg2[%c0, %c0_1, %c0_2] : memref<2x4x128xf32, #tpu.memory_space<vmem>>, vector<2x4x128xf32>
    %c0_3 = arith.constant 0 : index
    %c0_4 = arith.constant 0 : index
    %c0_5 = arith.constant 0 : index
    %4 = vector.load %arg3[%c0_3, %c0_4, %c0_5] : memref<2x4x128xf32, #tpu.memory_space<vmem>>, vector<2x4x128xf32>
    %c0_6 = arith.constant 0 : index
    %c0_7 = arith.constant 0 : index
    %5 = vector.load %arg4[%c0_6, %c0_7] : memref<2x128xf32, #tpu.memory_space<vmem>>, vector<2x128xf32>
    %6 = arith.subf %3, %4 : vector<2x4x128xf32>
    %7 = math.absf %6 : vector<2x4x128xf32>
    %cst = arith.constant 1.000000e+00 : f32
    %8 = vector.broadcast %cst : f32 to vector<2x4x128xf32>
    %9 = arith.cmpf ole, %7, %8 : vector<2x4x128xf32>
    %cst_8 = arith.constant 5.000000e-01 : f32
    %10 = vector.broadcast %cst_8 : f32 to vector<2x4x128xf32>
    %11 = arith.mulf %10, %7 : vector<2x4x128xf32>
    %12 = arith.mulf %11, %7 : vector<2x4x128xf32>
    %cst_9 = arith.constant 5.000000e-01 : f32
    %13 = vector.broadcast %cst_9 : f32 to vector<2x4x128xf32>
    %14 = arith.subf %7, %13 : vector<2x4x128xf32>
    %cst_10 = arith.constant 1.000000e+00 : f32
    %15 = vector.broadcast %cst_10 : f32 to vector<2x4x128xf32>
    %16 = arith.mulf %15, %14 : vector<2x4x128xf32>
    %17 = arith.select %9, %12, %16 : vector<2x4x128xi1>, vector<2x4x128xf32>
    %cst_11 = arith.constant dense<0.000000e+00> : vector<2x128xf32>
    %18 = vector.multi_reduction <add>, %17, %cst_11 [1] : vector<2x4x128xf32> to vector<2x128xf32>
    %cst_12 = arith.constant 7.812500e-03 : f32
    %19 = vector.broadcast %cst_12 : f32 to vector<2x128xf32>
    %20 = arith.mulf %18, %19 : vector<2x128xf32>
    %21 = arith.mulf %6, %6 : vector<2x4x128xf32>
    %cst_13 = arith.constant dense<0.000000e+00> : vector<2x128xf32>
    %22 = vector.multi_reduction <add>, %21, %cst_13 [1] : vector<2x4x128xf32> to vector<2x128xf32>
    %23 = math.sqrt %22 : vector<2x128xf32>
    %24 = math.log1p %23 : vector<2x128xf32>
    %25 = arith.mulf %24, %5 : vector<2x128xf32>
    %cst_14 = arith.constant 3.125000e-02 : f32
    %26 = vector.broadcast %cst_14 : f32 to vector<2x128xf32>
    %27 = arith.mulf %25, %26 : vector<2x128xf32>
    %28 = arith.addf %20, %27 : vector<2x128xf32>
    %29 = arith.maximumf %3, %4 : vector<2x4x128xf32>
    %cst_15 = arith.constant dense<0xFF800000> : vector<2x128xf32>
    %30 = vector.multi_reduction <maximumf>, %29, %cst_15 [1] : vector<2x4x128xf32> to vector<2x128xf32>
    %31 = vector.shape_cast %30 : vector<2x128xf32> to vector<2x1x128xf32>
    %32 = vector.broadcast %31 : vector<2x1x128xf32> to vector<2x4x128xf32>
    %33 = arith.subf %3, %32 : vector<2x4x128xf32>
    %34 = math.exp %33 : vector<2x4x128xf32>
    %cst_16 = arith.constant dense<0.000000e+00> : vector<2x128xf32>
    %35 = vector.multi_reduction <add>, %34, %cst_16 [1] : vector<2x4x128xf32> to vector<2x128xf32>
    %36 = vector.broadcast %31 : vector<2x1x128xf32> to vector<2x4x128xf32>
    %37 = arith.subf %4, %36 : vector<2x4x128xf32>
    %38 = math.exp %37 : vector<2x4x128xf32>
    %cst_17 = arith.constant dense<0.000000e+00> : vector<2x128xf32>
    %39 = vector.multi_reduction <add>, %38, %cst_17 [1] : vector<2x4x128xf32> to vector<2x128xf32>
    %cst_18 = arith.constant 0.000000e+00 : f32
    %40 = vector.broadcast %cst_18 : f32 to vector<2x4x128xf32>
    %41 = arith.subf %40, %6 : vector<2x4x128xf32>
    %42 = arith.mulf %38, %41 : vector<2x4x128xf32>
    %cst_19 = arith.constant dense<0.000000e+00> : vector<2x128xf32>
    %43 = vector.multi_reduction <add>, %42, %cst_19 [1] : vector<2x4x128xf32> to vector<2x128xf32>
    %cst_20 = arith.constant 1.000000e+00 : f32
    %44 = vector.broadcast %cst_20 : f32 to vector<2x128xf32>
    %45 = arith.divf %44, %39 : vector<2x128xf32>
    %46 = arith.mulf %43, %45 : vector<2x128xf32>
    %47 = arith.mulf %35, %45 : vector<2x128xf32>
    %48 = math.log %47 : vector<2x128xf32>
    %49 = arith.addf %46, %48 : vector<2x128xf32>
    %cst_21 = arith.constant 5.000000e-01 : f32
    %50 = vector.broadcast %cst_21 : f32 to vector<2x128xf32>
    %51 = arith.mulf %49, %50 : vector<2x128xf32>
    %52 = arith.addf %28, %51 : vector<2x128xf32>
    %c0_22 = arith.constant 0 : index
    %c0_23 = arith.constant 0 : index
    %c0_24 = arith.constant 0 : index
    %53 = vector.load %arg5[%c0_22, %c0_23, %c0_24] : memref<1x2x128xf32, #tpu.memory_space<vmem>>, vector<1x2x128xf32>
    %54 = vector.shape_cast %53 : vector<1x2x128xf32> to vector<2x128xf32>
    %55 = arith.addf %54, %52 : vector<2x128xf32>
    %c0_25 = arith.constant 0 : index
    %c0_26 = arith.constant 0 : index
    %c0_27 = arith.constant 0 : index
    %56 = vector.load %arg5[%c0_25, %c0_26, %c0_27] : memref<1x2x128xf32, #tpu.memory_space<vmem>>, vector<1x2x128xf32>
    %57 = vector.shape_cast %56 : vector<1x2x128xf32> to vector<2x128xf32>
    %58 = vector.shape_cast %55 : vector<2x128xf32> to vector<1x2x128xf32>
    tpu.vector_store %arg5[%c0_25, %c0_26, %c0_27], %58 {strides = array<i32>} : memref<1x2x128xf32, #tpu.memory_space<vmem>>, vector<1x2x128xf32>,
    return
  }
  func.func @transform_0(%arg0: i32, %arg1: i32) -> (i32, i32, i32) {
    %c1_i32 = arith.constant 1 : i32
    %0 = arith.muli %arg0, %c1_i32 : i32
    %1 = arith.addi %0, %arg1 : i32
    %c0_i32 = arith.constant 0 : i32
    %c0_i32_0 = arith.constant 0 : i32
    %c0_i32_1 = arith.constant 0 : i32
    return %c0_i32, %c0_i32_0, %1 : i32, i32, i32
  }
  func.func @transform_1(%arg0: i32, %arg1: i32) -> (i32, i32, i32) {
    %c1_i32 = arith.constant 1 : i32
    %0 = arith.muli %arg0, %c1_i32 : i32
    %1 = arith.addi %0, %arg1 : i32
    %c0_i32 = arith.constant 0 : i32
    %c0_i32_0 = arith.constant 0 : i32
    %c0_i32_1 = arith.constant 0 : i32
    return %c0_i32, %c0_i32_0, %1 : i32, i32, i32
  }
  func.func @transform_2(%arg0: i32, %arg1: i32) -> (i32, i32) {
    %c0_i32 = arith.constant 0 : i32
    %c0_i32_0 = arith.constant 0 : i32
    %c0_i32_1 = arith.constant 0 : i32
    return %c0_i32, %c0_i32_0 : i32, i32
  }
  func.func @transform_3(%arg0: i32, %arg1: i32) -> (i32, i32, i32) {
    %c0_i32 = arith.constant 0 : i32
    %c0_i32_0 = arith.constant 0 : i32
    %c0_i32_1 = arith.constant 0 : i32
    return %arg0, %c0_i32, %c0_i32_0 : i32, i32, i32
  }
}

</mosaic_0001>

<llo_original>
// kernel: tpu_custom_call.1
$region0: #{tpu_custom_call.1}
  #allocation0 [shape = 'u32[]', space=smem, size = 0x4, offset = 0x4, fixed_abs, tag = 'smem constant byte address 0x4 - core index']
  #allocation1 [shape = 'u32[144,128]{1,0:T(1,128)}', space=vmem, size = 0x12000, scoped, tag = 'internal scratch']
  %s0 = inlined_call_operand.hbm [shape: f32[2,4,128], index: 0, kind: input, shape index: {}]
  %s1 = inlined_call_operand.hbm [shape: f32[2,4,128], index: 1, kind: input, shape index: {}]
  %s2 = inlined_call_operand.vmem [shape: f32[2,128], index: 2, kind: input, shape index: {}]
  %s3 = inlined_call_operand.hbm [shape: f32[1,2,128], index: 3, kind: output, shape index: {}]
  %s4 = sld [smem:[#allocation0]]
  $region34: #{tpu_custom_call.1} parent=0
    _
  %s6 = ssub.s32 1, %s4
  %s7 = scalar_select 0, %s6, %s4
  $region1: #{tpu_custom_call.1} parent=0
    #allocation2 [shape = 'u8[4096]{0}', space=vmem, size = 0x1000, scoped, tag = 'input window, operand 0, single buffered']
    #allocation3 [shape = 's32[1]{0}', space=sflag, size = 0x4, scoped, tag = 'scoped memory for tpu_custom_call.1']
    #allocation4 [shape = 's32[1]{0}', space=sflag, size = 0x4, scoped, tag = 'scoped memory for tpu_custom_call.1']
    #allocation5 [shape = 'u8[4096]{0}', space=vmem, size = 0x1000, scoped, tag = 'input window, operand 1, single buffered']
    #allocation6 [shape = 's32[1]{0}', space=sflag, size = 0x4, scoped, tag = 'scoped memory for tpu_custom_call.1']
    #allocation7 [shape = 'u8[1024]{0}', space=vmem, size = 0x400, scoped, tag = 'output window, operand 0, single buffered']
    %8 = vsyncpa [#allocation3], 0
    %9 = vsyncpa [#allocation6], 0
    %10 = vsyncpa [#allocation4], 0
    // Predicated region
    $region2: #{tpu_custom_call.1} parent=1 // pred_check
      _
    $region3: #{tpu_custom_call.1} parent=1 // pred_check_branch
      %12 = sbr.rel (0) target = $region5
    $region4: #{tpu_custom_call.1} parent=1 // pred_region
      %s13 = sadd.s32 0, 0
      %s15 = ssub.s32 128, 128
      %16 = vsyncadd [#allocation3], %s15
      %s17 = smul.addr %s13, 64
      %s18 = scalar_lea.hbm %s0, %s17
      %s19 = sshll.u32 [#allocation2], 4
      %s20 = int_to_ptr.vmem [resolvable:$true] %s19
      %25 = dma.hbm_to_vmem [thread:$0]  %s18, 128, %s20, [#allocation3], 64, 64, 4
    $region5: #{tpu_custom_call.1} parent=1 // pred_fallthru
      _
    // Predicated region
    $region6: #{tpu_custom_call.1} parent=1 // pred_check
      _
    $region7: #{tpu_custom_call.1} parent=1 // pred_check_branch
      %27 = sbr.rel (0) target = $region9
    $region8: #{tpu_custom_call.1} parent=1 // pred_region
      %s28 = sadd.s32 0, 0
      %s30 = ssub.s32 128, 128
      %31 = vsyncadd [#allocation6], %s30
      %s32 = smul.addr %s28, 64
      %s33 = scalar_lea.hbm %s1, %s32
      %s34 = sshll.u32 [#allocation5], 4
      %s35 = int_to_ptr.vmem [resolvable:$true] %s34
      %40 = dma.hbm_to_vmem [thread:$0]  %s33, 128, %s35, [#allocation6], 64, 64, 4
    $region9: #{tpu_custom_call.1} parent=1 // pred_fallthru
      _
    // Predicated region
    $region10: #{tpu_custom_call.1} parent=1 // pred_check
      _
    $region11: #{tpu_custom_call.1} parent=1 // pred_check_branch
      %42 = sbr.rel (0) target = $region13
    $region12: #{tpu_custom_call.1} parent=1 // pred_region
      _
    $region13: #{tpu_custom_call.1} parent=1 // pred_fallthru
      _
    // Predicated region
    $region14: #{tpu_custom_call.1} parent=1 // pred_check
      _
    $region15: #{tpu_custom_call.1} parent=1 // pred_check_branch
      %44 = sbr.rel (0) target = $region17
    $region16: #{tpu_custom_call.1} parent=1 // pred_region
      %45 = dma.done [#allocation3], 128
    $region17: #{tpu_custom_call.1} parent=1 // pred_fallthru
      _
    // Predicated region
    $region18: #{tpu_custom_call.1} parent=1 // pred_check
      _
    $region19: #{tpu_custom_call.1} parent=1 // pred_check_branch
      %47 = sbr.rel (0) target = $region21
    $region20: #{tpu_custom_call.1} parent=1 // pred_region
      %48 = dma.done [#allocation6], 128
    $region21: #{tpu_custom_call.1} parent=1 // pred_fallthru
      _
    %s49 = sadd.s32 0, 0
    %s50 = sadd.s32 0, 0
    %p51 = scmp.eq.s32.totalorder 0, 0
    // Predicated region
    $region22: #{tpu_custom_call.1} parent=1 // pred_check
      %p52 = pneg %p51
    $region23: #{tpu_custom_call.1} parent=1 // pred_check_branch
      %54 = sbr.rel (%p52) target = $region25
    $region24: #{tpu_custom_call.1} parent=1 // pred_region
      %55 = vst [vmem:[#allocation7] sm:$0x3] 0.0
    $region25: #{tpu_custom_call.1} parent=1 // pred_fallthru
      _
    %v56 = vld [vmem:[#allocation2] sm:$0xf]
    %v57 = vld [vmem:[#allocation2 + $0x4] sm:$0xf]
    %v58 = vld [vmem:[#allocation5] sm:$0xf]
    %v59 = vld [vmem:[#allocation5 + $0x4] sm:$0xf]
    %v60 = vld [vmem:[%s2] sm:$0x3]
    %v61 = vsub.f32 %v56, %v58
    %v62 = vsub.f32 %v57, %v59
    %v63 = vand.u32 2147483647, %v61
    %v64 = vand.u32 2147483647, %v62
    %vm65 = vcmp.le.f32.partialorder %v63, 1.0
    %vm66 = vcmp.le.f32.partialorder %v64, 1.0
    %v67 = vmul.f32 %v63, 0.5
    %v68 = vmul.f32 %v64, 0.5
    %v69 = vmul.f32 %v67, %v63
    %v70 = vmul.f32 %v68, %v64
    %v71 = vsub.f32 %v63, 0.5
    %v72 = vsub.f32 %v64, 0.5
    %v73 = vsel %vm65, %v69, %v71
    %v74 = vsel %vm66, %v70, %v72
    %vm75 = vcmask 1043456
    %v76 = vsel %vm75, %v73, 0.0
    %v77 = vrot.slane %v76, 4
    %v78 = vadd.f32 %v76, %v77
    %v79 = vrot.slane %v78, 2
    %v80 = vadd.f32 %v78, %v79
    %v81 = vrot.slane %v80, 1
    %v82 = vadd.f32 %v80, %v81
    %v83 = vsel %vm75, %v74, 0.0
    %v84 = vrot.slane %v83, 4
    %v85 = vadd.f32 %v83, %v84
    %v86 = vrot.slane %v85, 2
    %v87 = vadd.f32 %v85, %v86
    %v88 = vrot.slane %v87, 1
    %v89 = vadd.f32 %v87, %v88
    %v90 = vmul.f32 %v82, 0.0078125
    %v91 = vmul.f32 %v89, 0.0078125
    %v92 = vmul.f32 %v61, %v61
    %v93 = vmul.f32 %v62, %v62
    %v94 = vsel %vm75, %v92, 0.0
    %v95 = vrot.slane %v94, 4
    %v96 = vadd.f32 %v94, %v95
    %v97 = vrot.slane %v96, 2
    %v98 = vadd.f32 %v96, %v97
    %v99 = vrot.slane %v98, 1
    %v100 = vadd.f32 %v98, %v99
    %v101 = vsel %vm75, %v93, 0.0
    %v102 = vrot.slane %v101, 4
    %v103 = vadd.f32 %v101, %v102
    %v104 = vrot.slane %v103, 2
    %v105 = vadd.f32 %v103, %v104
    %v106 = vrot.slane %v105, 1
    %v107 = vadd.f32 %v105, %v106
    %v108 = vrsqrt.pop %v100
    %v109 = vmul.f32 %v100, %v108
    %vm110 = vcmp.eq.f32.partialorder %v100, inf
    %v111 = vsel %vm110, %v100, %v109
    %vm112 = vcmp.eq.f32.partialorder %v100, 0.0
    %v113 = vand.u32 %v100, 2147483648
    %v114 = vsel %vm112, %v113, %v111
    %v115 = vrsqrt.pop %v107
    %v116 = vmul.f32 %v107, %v115
    %vm117 = vcmp.eq.f32.partialorder %v107, inf
    %v118 = vsel %vm117, %v107, %v116
    %vm119 = vcmp.eq.f32.partialorder %v107, 0.0
    %v120 = vand.u32 %v107, 2147483648
    %v121 = vsel %vm119, %v120, %v118
    %v122 = vadd.f32 %v114, 1.0
    %v123 = vlog2.pop %v122
    %v124 = vmul.f32 %v123, 0.6931472
    %v125 = vmul.f32 -0.5, %v114
    %v126 = vadd.f32 %v125, 1.0
    %v127 = vmul.f32 %v126, %v114
    %v128 = vand.u32 2147483647, %v114
    %vm129 = vcmp.lt.f32.partialorder %v128, 0.0004427343
    %v130 = vsel %vm129, %v127, %v124
    %v131 = vadd.f32 %v121, 1.0
    %v132 = vlog2.pop %v131
    %v133 = vmul.f32 %v132, 0.6931472
    %v134 = vmul.f32 -0.5, %v121
    %v135 = vadd.f32 %v134, 1.0
    %v136 = vmul.f32 %v135, %v121
    %v137 = vand.u32 2147483647, %v121
    %vm138 = vcmp.lt.f32.partialorder %v137, 0.0004427343
    %v139 = vsel %vm138, %v136, %v133
    %v141 = vrot.slane %v60, 1
    %v144 = vmul.f32 %v130, %v60
    %v145 = vmul.f32 %v139, %v141
    %v146 = vmul.f32 %v144, 0.03125
    %v147 = vmul.f32 %v145, 0.03125
    %v148 = vadd.f32 %v90, %v146
    %v149 = vadd.f32 %v91, %v147
    %v150 = vmax.f32 %v56, %v58
    %v151 = vmax.f32 %v57, %v59
    %v152 = vsel %vm75, %v150, -inf
    %v153 = vrot.slane %v152, 4
    %v154 = vmax.f32 %v152, %v153
    %v155 = vrot.slane %v154, 2
    %v156 = vmax.f32 %v154, %v155
    %v157 = vrot.slane %v156, 1
    %v158 = vmax.f32 %v156, %v157
    %v159 = vsel %vm75, %v151, -inf
    %v160 = vrot.slane %v159, 4
    %v161 = vmax.f32 %v159, %v160
    %v162 = vrot.slane %v161, 2
    %v163 = vmax.f32 %v161, %v162
    %v164 = vrot.slane %v163, 1
    %v165 = vmax.f32 %v163, %v164
    %v166 = vsub.f32 %v56, %v158
    %v167 = vsub.f32 %v57, %v165
    %v168 = vmul.f32 %v166, 1.442695
    %v169 = vpow.pop %v168
    %v170 = vmul.f32 %v167, 1.442695
    %v171 = vpow.pop %v170
    %v172 = vsel %vm75, %v169, 0.0
    %v173 = vrot.slane %v172, 4
    %v174 = vadd.f32 %v172, %v173
    %v175 = vrot.slane %v174, 2
    %v176 = vadd.f32 %v174, %v175
    %v177 = vrot.slane %v176, 1
    %v178 = vadd.f32 %v176, %v177
    %v179 = vsel %vm75, %v171, 0.0
    %v180 = vrot.slane %v179, 4
    %v181 = vadd.f32 %v179, %v180
    %v182 = vrot.slane %v181, 2
    %v183 = vadd.f32 %v181, %v182
    %v184 = vrot.slane %v183, 1
    %v185 = vadd.f32 %v183, %v184
    %v186 = vsub.f32 %v58, %v158
    %v187 = vsub.f32 %v59, %v165
    %v188 = vmul.f32 %v186, 1.442695
    %v189 = vpow.pop %v188
    %v190 = vmul.f32 %v187, 1.442695
    %v191 = vpow.pop %v190
    %v192 = vsel %vm75, %v189, 0.0
    %v193 = vrot.slane %v192, 4
    %v194 = vadd.f32 %v192, %v193
    %v195 = vrot.slane %v194, 2
    %v196 = vadd.f32 %v194, %v195
    %v197 = vrot.slane %v196, 1
    %v198 = vadd.f32 %v196, %v197
    %v199 = vsel %vm75, %v191, 0.0
    %v200 = vrot.slane %v199, 4
    %v201 = vadd.f32 %v199, %v200
    %v202 = vrot.slane %v201, 2
    %v203 = vadd.f32 %v201, %v202
    %v204 = vrot.slane %v203, 1
    %v205 = vadd.f32 %v203, %v204
    %v206 = vsub.f32 0.0, %v61
    %v207 = vsub.f32 0.0, %v62
    %v208 = vmul.f32 %v189, %v206
    %v209 = vmul.f32 %v191, %v207
    %v210 = vsel %vm75, %v208, 0.0
    %v211 = vrot.slane %v210, 4
    %v212 = vadd.f32 %v210, %v211
    %v213 = vrot.slane %v212, 2
    %v214 = vadd.f32 %v212, %v213
    %v215 = vrot.slane %v214, 1
    %v216 = vadd.f32 %v214, %v215
    %v217 = vsel %vm75, %v209, 0.0
    %v218 = vrot.slane %v217, 4
    %v219 = vadd.f32 %v217, %v218
    %v220 = vrot.slane %v219, 2
    %v221 = vadd.f32 %v219, %v220
    %v222 = vrot.slane %v221, 1
    %v223 = vadd.f32 %v221, %v222
    %v224 = vrcp.pop %v198
    %v225 = vmul.f32 1.0, %v224
    %v226 = vrcp.pop %v205
    %v227 = vmul.f32 1.0, %v226
    %v228 = vmul.f32 %v216, %v225
    %v229 = vmul.f32 %v223, %v227
    %v230 = vmul.f32 %v178, %v225
    %v231 = vmul.f32 %v185, %v227
    %v232 = vlog2.pop %v230
    %v233 = vmul.f32 %v232, 0.6931472
    %v234 = vlog2.pop %v231
    %v235 = vmul.f32 %v234, 0.6931472
    %v236 = vadd.f32 %v228, %v233
    %v237 = vadd.f32 %v229, %v235
    %v238 = vmul.f32 %v236, 0.5
    %v239 = vmul.f32 %v237, 0.5
    %v240 = vadd.f32 %v148, %v238
    %v241 = vadd.f32 %v149, %v239
    %v242 = vld [vmem:[#allocation7] sm:$0x3]
    %v245 = vrot.slane %v241, 7
    %vm246 = vcmask 1041409
    %v247 = vsel %vm246, %v245, %v240
    %v249 = vadd.f32 %v242, %v247
    %250 = vst [vmem:[#allocation7] sm:$0x3] %v249
    // Predicated region
    $region26: #{tpu_custom_call.1} parent=1 // pred_check
      _
    $region27: #{tpu_custom_call.1} parent=1 // pred_check_branch
      %252 = sbr.rel (0) target = $region29
    $region28: #{tpu_custom_call.1} parent=1 // pred_region
      %s254 = ssub.s32 32, 32
      %255 = vsyncadd [#allocation4], %s254
      %s257 = sshll.u32 [#allocation7], 4
      %s258 = int_to_ptr.vmem [resolvable:$true] %s257
      %260 = dma.vmem_to_hbm [thread:$0]  %s258, 32, %s3, [#allocation4]
    $region29: #{tpu_custom_call.1} parent=1 // pred_fallthru
      _
    // Predicated region
    $region30: #{tpu_custom_call.1} parent=1 // pred_check
      _
    $region31: #{tpu_custom_call.1} parent=1 // pred_check_branch
      %262 = sbr.rel (0) target = $region33
    $region32: #{tpu_custom_call.1} parent=1 // pred_region
      %263 = dma.done [#allocation4], 32
    $region33: #{tpu_custom_call.1} parent=1 // pred_fallthru
      _
    %264 = vsyncpa [#allocation3], 1
    %265 = vsyncpa [#allocation6], 1
    %266 = vsyncpa [#allocation4], 1

</llo_original>
